<compile_context>
chip_gen: v7x
topology: tpu7x:2x2x1
jax: 0.10.0
libtpu: 0.0.40
codegen_flags: <defaults>
</compile_context>

<pallas_src>
import math
import functools

import jax
import jax.numpy as jnp
import numpy as np
from jax.experimental import pallas as pl
from jax.experimental.pallas import tpu as pltpu


def _pick_tile(p, prefs=(512, 256, 128)):
    """Largest preferred pixel tile (multiple of 128) dividing p, else the full dim."""
    for t in prefs:
        if p % t == 0:
            return t
    return p


# ----------------------------------------------------------------------------
# Kernel 1: rotated-weight im2col matmul + pooled-mean accumulation
# grid = (B, n_pixel_tiles); pixel-tile is the last ("arbitrary") axis.
# ----------------------------------------------------------------------------
def _conv_pool_kernel(wmat_ref, patches_ref, conv_ref, pooled_ref, *, inv_npix):
    pt = pl.program_id(1)
    # (G*Cout, KKC) @ (KKC, TILE_P) -> (G*Cout, TILE_P): lane axis = pixels (lane-dense).
    acc = jnp.dot(wmat_ref[...], patches_ref[0],
                  preferred_element_type=jnp.float32)
    conv_ref[0] = acc

    @pl.when(pt == 0)
    def _():
        pooled_ref[...] = jnp.zeros_like(pooled_ref)

    # partial spatial mean for this pixel tile, accumulated into the resident pooled block
    pooled_ref[...] += (jnp.sum(acc, axis=-1) * inv_npix).reshape(1, 1, -1)


# ----------------------------------------------------------------------------
# Kernel 2a: attention over orientations (scores + softmax), computed once.
# ----------------------------------------------------------------------------
def _attn_kernel(pooled_ref, bias_ref, alpha_ref, *, scale):
    pooled = pooled_ref[...]                                            # (B, G, C)
    s = jnp.sum(pooled[:, :, None, :] * pooled[:, None, :, :], axis=-1) * scale
    s = s + bias_ref[...]                                               # (1, 1, G)
    s = s - jnp.max(s, axis=-1, keepdims=True)
    e = jnp.exp(s)
    alpha_ref[...] = e / jnp.sum(e, axis=-1, keepdims=True)             # (B, G, G)


# ----------------------------------------------------------------------------
# Kernel 2b: orientation mixing over lane-dense pixel tiles (no rotated stack).
# ----------------------------------------------------------------------------
def _mix_kernel(alpha_ref, feats_ref, out_ref):
    a = alpha_ref[...]                                                  # (B, G, G)
    G, B = out_ref.shape[0], out_ref.shape[1]
    feats = [feats_ref[gp] for gp in range(G)]                          # (B, Cout, TILE_P)
    for g in range(G):
        acc = a[:, g, 0].reshape(B, 1, 1) * feats[0]
        for gp in range(1, G):
            acc = acc + a[:, g, gp].reshape(B, 1, 1) * feats[gp]
        out_ref[g] = acc


# ----------------------------------------------------------------------------
# Forward pass (glue in JAX, compute in the Pallas kernels above)
# ----------------------------------------------------------------------------
def dbage_conv_forward(x, weight, bias, *, stride=1, padding=1, n_ori=4):
    if x.ndim == 5:                       # comes from a previous DBAGEConv
        x = jnp.mean(x, axis=2)           # (B, C_in, H, W)
    B, Cin, H, W = x.shape
    Cout, _, K, _ = weight.shape
    G = n_ori
    Ho = (H + 2 * padding - K) // stride + 1
    Wo = (W + 2 * padding - K) // stride + 1
    P = Ho * Wo
    assert Ho == Wo, "rot90 of feature maps assumes square spatial dims"
    assert n_ori % 4 == 0, "rotation decomposition assumes n_ori is a multiple of 4"
    # TODO(synk): n_ori not a multiple of 4 would need the original per-(g,gp) rotation path.

    kkc = K * K * Cin
    kkc_pad = ((kkc + 7) // 8) * 8        # pad contraction dim to a sublane multiple
    GC = G * Cout
    tile_p = _pick_tile(P)

    # ---- glue: rotated-weight matrix (G*Cout, K*K*Cin), bf16 for the MXU
    w_rots = jnp.stack([jnp.rot90(weight, k=g % 4, axes=(-2, -1)) for g in range(G)], axis=0)
    wmat_t = jnp.transpose(w_rots, (0, 1, 3, 4, 2)).reshape(GC, kkc)
    wmat_t = jnp.pad(wmat_t, ((0, 0), (0, kkc_pad - kkc))).astype(jnp.bfloat16)

    # ---- glue: im2col patches laid out (B, K*K*Cin, Ho*Wo) -> pixels on the lane axis
    x_pad = jnp.pad(x, ((0, 0), (0, 0), (padding, padding), (padding, padding)))
    taps = [x_pad[:, :, kh:kh + stride * Ho:stride, kw:kw + stride * Wo:stride]
            for kh in range(K) for kw in range(K)]
    patches = jnp.stack(taps, axis=1).reshape(B, kkc, P)
    patches = jnp.pad(patches, ((0, 0), (0, kkc_pad - kkc), (0, 0))).astype(jnp.bfloat16)

    # ---- kernel 1: conv for all orientations + pooled mean
    conv_flat, pooled = pl.pallas_call(
        functools.partial(_conv_pool_kernel, inv_npix=1.0 / P),
        out_shape=(jax.ShapeDtypeStruct((B, GC, P), jnp.float32),
                   jax.ShapeDtypeStruct((B, 1, GC), jnp.float32)),
        grid=(B, P // tile_p),
        in_specs=[pl.BlockSpec((GC, kkc_pad), lambda b, t: (0, 0)),
                  pl.BlockSpec((1, kkc_pad, tile_p), lambda b, t: (b, 0, t))],
        out_specs=(pl.BlockSpec((1, GC, tile_p), lambda b, t: (b, 0, t)),
                   pl.BlockSpec((1, 1, GC), lambda b, t: (b, 0, 0))),
        compiler_params=pltpu.CompilerParams(
            dimension_semantics=("parallel", "arbitrary")),
    )(wmat_t, patches)

    # ---- kernel 2a: attention weights alpha (B, G, G)
    pooled_bgc = pooled.reshape(B, G, Cout)
    scale = 1.0 / math.sqrt(Cout)
    bias3 = bias.reshape(1, 1, G).astype(jnp.float32)
    alpha = pl.pallas_call(
        functools.partial(_attn_kernel, scale=scale),
        out_shape=jax.ShapeDtypeStruct((B, G, G), jnp.float32),
        grid=(1,),
        in_specs=[pl.BlockSpec((B, G, Cout), lambda i: (0, 0, 0)),
                  pl.BlockSpec((1, 1, G), lambda i: (0, 0, 0))],
        out_specs=pl.BlockSpec((B, G, G), lambda i: (0, 0, 0)),
        compiler_params=pltpu.CompilerParams(dimension_semantics=("arbitrary",)),
    )(pooled_bgc, bias3)

    # ---- glue: pre-rotate each conv map ONCE by -gp (pure data movement, 1x conv bytes)
    conv_g = conv_flat.reshape(B, G, Cout, P).transpose(1, 0, 2, 3)       # (G, B, Cout, P)
    conv_sp = conv_g.reshape(G, B, Cout, Ho, Wo)
    feats_pre = jnp.stack(
        [jnp.rot90(conv_sp[gp], k=(-gp) % 4, axes=(-2, -1)) for gp in range(G)],
        axis=0).reshape(G, B, Cout, P)

    # ---- kernel 2b: alpha-weighted orientation mixing (lane-dense pixel tiles)
    mix = pl.pallas_call(
        _mix_kernel,
        out_shape=jax.ShapeDtypeStruct((G, B, Cout, P), jnp.float32),
        grid=(P // tile_p,),
        in_specs=[pl.BlockSpec((B, G, G), lambda t: (0, 0, 0)),
                  pl.BlockSpec((G, B, Cout, tile_p), lambda t: (0, 0, 0, t))],
        out_specs=pl.BlockSpec((G, B, Cout, tile_p), lambda t: (0, 0, 0, t)),
        compiler_params=pltpu.CompilerParams(dimension_semantics=("parallel",)),
    )(alpha, feats_pre)

    # ---- glue: post-rotate each mixed map ONCE by +g, back to (B, Cout, G, Ho, Wo)
    mix_sp = mix.reshape(G, B, Cout, Ho, Wo)
    out_g = jnp.stack([jnp.rot90(mix_sp[g], k=g % 4, axes=(-2, -1)) for g in range(G)],
                      axis=0)
    return jnp.transpose(out_g, (1, 2, 0, 3, 4))                           # (B, Cout, G, H, W)


# ----------------------------------------------------------------------------
# Pure-JAX reference (mirrors the PyTorch forward exactly) for validation
# ----------------------------------------------------------------------------
def reference_forward(x, weight, bias, *, stride=1, padding=1, n_ori=4):
    if x.ndim == 5:
        x = jnp.mean(x, axis=2)
    G = n_ori
    Cout = weight.shape[0]
    convs = []
    for g in range(G):
        w = jnp.rot90(weight, k=g % 4, axes=(-2, -1))
        c = jax.lax.conv_general_dilated(
            x, w, window_strides=(stride, stride),
            padding=[(padding, padding), (padding, padding)],
            dimension_numbers=('NCHW', 'OIHW', 'NCHW'))
        convs.append(c)
    convs = jnp.stack(convs, axis=2)                                 # (B, Cout, G, H, W)
    pooled = jnp.transpose(jnp.mean(convs, axis=(3, 4)), (0, 2, 1))  # (B, G, Cout)
    s = jnp.einsum('bgc,bkc->bgk', pooled, pooled) / math.sqrt(Cout)
    s = s + bias.reshape(1, 1, -1)
    alpha = jax.nn.softmax(s, axis=2)
    outs = []
    for g in range(G):
        acc = 0
        for gp in range(G):
            w_att = alpha[:, g, gp].reshape(-1, 1, 1, 1)
            feat = jnp.rot90(convs[:, :, gp], k=((g - gp) % n_ori) % 4, axes=(-2, -1))
            acc = acc + w_att * feat
        outs.append(acc)
    return jnp.stack(outs, axis=2)


if __name__ == "__main__":
    # Small deterministic setup consistent with the module
    B, C_in, H, W = 2, 4, 16, 16
    C_out, K, stride, padding, n_ori = 8, 3, 1, 1, 4

    key = jax.random.PRNGKey(0)
    kx, kw = jax.random.split(key)
    x = jax.random.normal(kx, (B, C_in, H, W), jnp.float32)

    # kaiming_normal_(mode='fan_out', nonlinearity='relu'): std = sqrt(2 / (C_out*K*K))
    std = math.sqrt(2.0 / (C_out * K * K))
    weight = std * jax.random.normal(kw, (C_out, C_in, K, K), jnp.float32)
    bias = jnp.zeros((n_ori,), jnp.float32)

    out = dbage_conv_forward(x, weight, bias, stride=stride, padding=padding, n_ori=n_ori)
    out = jax.block_until_ready(out)

    ref = jax.block_until_ready(
        reference_forward(x, weight, bias, stride=stride, padding=padding, n_ori=n_ori))

    assert out.shape == (B, C_out, n_ori, H, W), out.shape
    # bf16 MXU operands -> slightly looser tolerance than pure-f32
    np.testing.assert_allclose(np.asarray(out), np.asarray(ref), rtol=5e-2, atol=5e-2)
    print("KERNEL_OK")
</pallas_src>

<mosaic_0001>
module attributes {stable_mosaic.version = 11 : i64} {
  func.func @_conv_pool_kernel(%arg0: i32, %arg1: i32, %arg2: memref<32x40xbf16, #tpu.memory_space<vmem>>, %arg3: memref<1x40x256xbf16, #tpu.memory_space<vmem>>, %arg4: memref<1x32x256xf32, #tpu.memory_space<vmem>>, %arg5: memref<1x1x32xf32, #tpu.memory_space<vmem>>) attributes {dimension_semantics = [#tpu.dimension_semantics<parallel>, #tpu.dimension_semantics<arbitrary>], iteration_bounds = array<i64: 2, 1>, scalar_prefetch = 0 : i64, scratch_operands = 0 : i64, tpu.core_type = #tpu.core_type<tc>, window_params = [{pipeline_mode = #tpu.pipeline_mode<synchronous>, transform_indices = @transform_0, window_bounds = array<i64: 32, 40>}, {transform_indices = @transform_1, window_bounds = array<i64: 1, 40, 256>}, {transform_indices = @transform_2, window_bounds = array<i64: 1, 32, 256>}, {transform_indices = @transform_3, window_bounds = array<i64: 1, 1, 32>}]} {
    %c0 = arith.constant 0 : index
    %c0_0 = arith.constant 0 : index
    %0 = vector.load %arg2[%c0, %c0_0] : memref<32x40xbf16, #tpu.memory_space<vmem>>, vector<32x40xbf16>
    %c0_1 = arith.constant 0 : index
    %c0_2 = arith.constant 0 : index
    %c0_3 = arith.constant 0 : index
    %1 = vector.load %arg3[%c0_1, %c0_2, %c0_3] : memref<1x40x256xbf16, #tpu.memory_space<vmem>>, vector<1x40x256xbf16>
    %2 = vector.shape_cast %1 : vector<1x40x256xbf16> to vector<40x256xbf16>
    %cst = arith.constant dense<0.000000e+00> : vector<32x256xf32>
    %3 = tpu.matmul %0, %2, %cst {dimension_numbers = #tpu.dot_dimension_numbers<[1], [0], [0], [1], [0, 0, 1, 1], [], []>} : vector<32x40xbf16>, vector<40x256xbf16>, vector<32x256xf32> -> vector<32x256xf32>
    %c0_4 = arith.constant 0 : index
    %c0_5 = arith.constant 0 : index
    %c0_6 = arith.constant 0 : index
    %4 = vector.load %arg4[%c0_4, %c0_5, %c0_6] : memref<1x32x256xf32, #tpu.memory_space<vmem>>, vector<1x32x256xf32>
    %5 = vector.shape_cast %4 : vector<1x32x256xf32> to vector<32x256xf32>
    %6 = vector.shape_cast %3 : vector<32x256xf32> to vector<1x32x256xf32>
    tpu.vector_store %arg4[%c0_4, %c0_5, %c0_6], %6 {strides = array<i32>} : memref<1x32x256xf32, #tpu.memory_space<vmem>>, vector<1x32x256xf32>,
    %c0_i32 = arith.constant 0 : i32
    %7 = arith.cmpi eq, %arg1, %c0_i32 : i32
    %8 = arith.extui %7 : i1 to i32
    %c0_i32_7 = arith.constant 0 : i32
    %9 = arith.cmpi ne, %8, %c0_i32_7 : i32
    scf.if %9 {
      %cst_16 = arith.constant 0.000000e+00 : f32
      %17 = vector.broadcast %cst_16 : f32 to vector<1x1x32xf32>
      %c0_17 = arith.constant 0 : index
      %c0_18 = arith.constant 0 : index
      %c0_19 = arith.constant 0 : index
      %18 = vector.load %arg5[%c0_17, %c0_18, %c0_19] : memref<1x1x32xf32, #tpu.memory_space<vmem>>, vector<1x1x32xf32>
      tpu.vector_store %arg5[%c0_17, %c0_18, %c0_19], %17 {strides = array<i32>} : memref<1x1x32xf32, #tpu.memory_space<vmem>>, vector<1x1x32xf32>,
    } else {
    }
    %c0_8 = arith.constant 0 : index
    %c0_9 = arith.constant 0 : index
    %c0_10 = arith.constant 0 : index
    %10 = vector.load %arg5[%c0_8, %c0_9, %c0_10] : memref<1x1x32xf32, #tpu.memory_space<vmem>>, vector<1x1x32xf32>
    %cst_11 = arith.constant dense<0.000000e+00> : vector<32xf32>
    %11 = vector.multi_reduction <add>, %3, %cst_11 [1] : vector<32x256xf32> to vector<32xf32>
    %cst_12 = arith.constant 3.906250e-03 : f32
    %12 = vector.broadcast %cst_12 : f32 to vector<32xf32>
    %13 = arith.mulf %11, %12 : vector<32xf32>
    %14 = vector.shape_cast %13 : vector<32xf32> to vector<1x1x32xf32>
    %15 = arith.addf %10, %14 : vector<1x1x32xf32>
    %c0_13 = arith.constant 0 : index
    %c0_14 = arith.constant 0 : index
    %c0_15 = arith.constant 0 : index
    %16 = vector.load %arg5[%c0_13, %c0_14, %c0_15] : memref<1x1x32xf32, #tpu.memory_space<vmem>>, vector<1x1x32xf32>
    tpu.vector_store %arg5[%c0_13, %c0_14, %c0_15], %15 {strides = array<i32>} : memref<1x1x32xf32, #tpu.memory_space<vmem>>, vector<1x1x32xf32>,
    return
  }
  func.func @transform_0(%arg0: i32, %arg1: i32) -> (i32, i32) {
    %c0_i32 = arith.constant 0 : i32
    %c0_i32_0 = arith.constant 0 : i32
    %c0_i32_1 = arith.constant 0 : i32
    return %c0_i32, %c0_i32_0 : i32, i32
  }
  func.func @transform_1(%arg0: i32, %arg1: i32) -> (i32, i32, i32) {
    %c0_i32 = arith.constant 0 : i32
    %c0_i32_0 = arith.constant 0 : i32
    return %arg0, %c0_i32, %arg1 : i32, i32, i32
  }
  func.func @transform_2(%arg0: i32, %arg1: i32) -> (i32, i32, i32) {
    %c0_i32 = arith.constant 0 : i32
    %c0_i32_0 = arith.constant 0 : i32
    return %arg0, %c0_i32, %arg1 : i32, i32, i32
  }
  func.func @transform_3(%arg0: i32, %arg1: i32) -> (i32, i32, i32) {
    %c0_i32 = arith.constant 0 : i32
    %c0_i32_0 = arith.constant 0 : i32
    %c0_i32_1 = arith.constant 0 : i32
    return %arg0, %c0_i32, %c0_i32_0 : i32, i32, i32
  }
}

</mosaic_0001>

<llo_original>
// kernel: tpu_custom_call.1
$region0: #{tpu_custom_call.1}
  #allocation0 [shape = 'u32[]', space=smem, size = 0x4, offset = 0x4, fixed_abs, tag = 'smem constant byte address 0x4 - core index']
  #allocation1 [shape = 'u32[144,128]{1,0:T(1,128)}', space=vmem, size = 0x12000, scoped, tag = 'internal scratch']
  %s0 = inlined_call_operand.hbm [shape: bf16[32,40], index: 0, kind: input, shape index: {}]
  %s1 = inlined_call_operand.hbm [shape: bf16[2,40,256], index: 1, kind: input, shape index: {}]
  %s2 = inlined_call_operand.hbm [shape: f32[2,32,256], index: 2, kind: output, shape index: {0}]
  %s3 = inlined_call_operand.hbm [shape: f32[2,1,32], index: 3, kind: output, shape index: {1}]
  %4 = xla_tuple %s2, %s3
  %s5 = sld [smem:[#allocation0]]
  $region61: #{tpu_custom_call.1} parent=0
    _
  %s7 = ssub.s32 1, %s5
  %s8 = scalar_select 0, %s7, %s5
  $region1: #{tpu_custom_call.1} parent=0
    #allocation2 [shape = 'u8[8192]{0}', space=vmem, size = 0x2000, scoped, tag = 'input window, operand 0, single buffered']
    #allocation3 [shape = 's32[2]{0}', space=sflag, size = 0x8, scoped, tag = 'scoped memory for tpu_custom_call.1']
    #allocation4 [shape = 's32[2]{0}', space=sflag, size = 0x8, scoped, tag = 'scoped memory for tpu_custom_call.1']
    #allocation5 [shape = 'u8[40960]{0}', space=vmem, size = 0xa000, scoped, tag = 'input window, operand 1']
    #allocation6 [shape = 's32[2]{0}', space=sflag, size = 0x8, scoped, tag = 'scoped memory for tpu_custom_call.1']
    #allocation7 [shape = 'u8[65536]{0}', space=vmem, size = 0x10000, scoped, tag = 'output window, operand 0']
    #allocation8 [shape = 'u8[1024]{0}', space=vmem, size = 0x400, scoped, tag = 'output window, operand 1']
    #allocation9 [shape = 's32[2]{0}', space=sflag, size = 0x8, scoped, tag = 'scoped memory for tpu_custom_call.1']
    %9 = vsyncpa [#allocation3], 0
    %10 = vsyncpa [#allocation6], 0
    %s11 = scalar_lea.sflag [#allocation6], 1
    %12 = vsyncpa %s11, 0
    %13 = vsyncpa [#allocation4], 0
    %s14 = scalar_lea.sflag [#allocation4], 1
    %15 = vsyncpa %s14, 0
    %16 = vsyncpa [#allocation9], 0
    %s17 = scalar_lea.sflag [#allocation9], 1
    %18 = vsyncpa %s17, 0
    loop: start=0, step=1, limit=4
    $region2: #{tpu_custom_call.1} parent=1 // loop_pre_header
      _
    $region3: #{tpu_custom_call.1} parent=1 // loop_header
      %s20 = sphi 0, %s24
      %p21 = scmp.ge.s32.totalorder %s20, 4
      %s27 = sphi 0, %s39
      %s28 = sphi 0, %s35
      %s29 = sphi 0, %s27
      %s30 = sphi 0, %s28
      %s31 = sphi 0, %s29
      %s32 = sphi 0, %s30
      %s40 = sphi 0, %s40
      %s42 = sphi 0, %s40
      %s43 = sphi 0, %s42
      %s57 = sphi 0, %s43
      %s65 = sphi 0, %s67
      %s68 = sphi 0, %s65
      %s69 = sphi 0, %s68
      %s85 = sphi 0, %s69
      %s93 = sphi 0, %s95
      %s96 = sphi 0, %s93
      %s97 = sphi 0, %s96
      %s113 = sphi 0, %s97
      %s119 = sphi 0, %s121
      %s122 = sphi 0, %s119
      %s123 = sphi 0, %s122
      %s139 = sphi 0, %s123
    $region4: #{tpu_custom_call.1} parent=1 // loop_header_branch
      %23 = sbr.rel (%p21) target = $region8
    $region5: #{tpu_custom_call.1} parent=1 // loop_body
      %s25 = ssub.s32 %s20, 1
      %s26 = ssub.s32 %s20, 2
      %s33 = sadd.s32 1, %s28
      %p34 = scmp.ge.s32.totalorder %s33, 1
      %s35 = scalar_select %p34, 0, %s33
      %s36 = sadd.s32 1, %s27
      %s37 = scalar_select %p34, %s36, %s27
      %p38 = scmp.ge.s32.totalorder %s37, 2
      %s39 = scalar_select %p38, 0, %s37
      %s41 = sadd.s32 %s40, 1
      %p44 = scmp.eq.s32.totalorder %s20, 1
      %p45 = scmp.ne.s32.totalorder %s40, %s42
      %p46 = scmp.eq.s32.totalorder %s20, 0
      %p47 = por %p45, %p46
      %p48 = scmp.ne.s32.totalorder %s40, %s42
      %p49 = scmp.eq.s32.totalorder %s25, 1
      %p50 = por %p48, %p49
      %p51 = scmp.ne.s32.totalorder %s42, %s43
      %p52 = scmp.eq.s32.totalorder %s25, 0
      %p53 = por %p51, %p52
      %p54 = scmp.ne.s32.totalorder %s42, %s43
      %p55 = scmp.eq.s32.totalorder %s26, 1
      %p56 = por %p54, %p55
      %p58 = scmp.ne.s32.totalorder %s43, %s57
      %p59 = scmp.eq.s32.totalorder %s26, 0
      %p60 = por %p58, %p59
      %s61 = ssub.s32 %s27, %s39
      %s62 = ssub.s32 %s28, %s35
      %s63 = sor.u32 %s61, %s62
      %p64 = scmp.eq.s32.totalorder %s63, 0
      %s66 = sadd.s32 %s65, 1
      %s67 = scalar_select %p64, %s65, %s66
      %p70 = pneg %p64
      %p71 = scmp.eq.s32.totalorder %s20, 1
      %p72 = por %p70, %p71
      %p73 = scmp.ne.s32.totalorder %s65, %s68
      %p74 = scmp.eq.s32.totalorder %s20, 0
      %p75 = por %p73, %p74
      %p76 = scmp.ne.s32.totalorder %s65, %s68
      %p77 = scmp.eq.s32.totalorder %s25, 1
      %p78 = por %p76, %p77
      %p79 = scmp.ne.s32.totalorder %s68, %s69
      %p80 = scmp.eq.s32.totalorder %s25, 0
      %p81 = por %p79, %p80
      %p82 = scmp.ne.s32.totalorder %s68, %s69
      %p83 = scmp.eq.s32.totalorder %s26, 1
      %p84 = por %p82, %p83
      %p86 = scmp.ne.s32.totalorder %s69, %s85
      %p87 = scmp.eq.s32.totalorder %s26, 0
      %p88 = por %p86, %p87
      %s89 = ssub.s32 %s27, %s39
      %s90 = ssub.s32 %s28, %s35
      %s91 = sor.u32 %s89, %s90
      %p92 = scmp.eq.s32.totalorder %s91, 0
      %s94 = sadd.s32 %s93, 1
      %s95 = scalar_select %p92, %s93, %s94
      %p98 = pneg %p92
      %p99 = scmp.eq.s32.totalorder %s20, 1
      %p100 = por %p98, %p99
      %p101 = scmp.ne.s32.totalorder %s93, %s96
      %p102 = scmp.eq.s32.totalorder %s20, 0
      %p103 = por %p101, %p102
      %p104 = scmp.ne.s32.totalorder %s93, %s96
      %p105 = scmp.eq.s32.totalorder %s25, 1
      %p106 = por %p104, %p105
      %p107 = scmp.ne.s32.totalorder %s96, %s97
      %p108 = scmp.eq.s32.totalorder %s25, 0
      %p109 = por %p107, %p108
      %p110 = scmp.ne.s32.totalorder %s96, %s97
      %p111 = scmp.eq.s32.totalorder %s26, 1
      %p112 = por %p110, %p111
      %p114 = scmp.ne.s32.totalorder %s97, %s113
      %p115 = scmp.eq.s32.totalorder %s26, 0
      %p116 = por %p114, %p115
      %s117 = ssub.s32 %s27, %s39
      %p118 = scmp.eq.s32.totalorder %s117, 0
      %s120 = sadd.s32 %s119, 1
      %s121 = scalar_select %p118, %s119, %s120
      %p124 = pneg %p118
      %p125 = scmp.eq.s32.totalorder %s20, 1
      %p126 = por %p124, %p125
      %p127 = scmp.ne.s32.totalorder %s119, %s122
      %p128 = scmp.eq.s32.totalorder %s20, 0
      %p129 = por %p127, %p128
      %p130 = scmp.ne.s32.totalorder %s119, %s122
      %p131 = scmp.eq.s32.totalorder %s25, 1
      %p132 = por %p130, %p131
      %p133 = scmp.ne.s32.totalorder %s122, %s123
      %p134 = scmp.eq.s32.totalorder %s25, 0
      %p135 = por %p133, %p134
      %p136 = scmp.ne.s32.totalorder %s122, %s123
      %p137 = scmp.eq.s32.totalorder %s26, 1
      %p138 = por %p136, %p137
      %p140 = scmp.ne.s32.totalorder %s123, %s139
      %p141 = scmp.eq.s32.totalorder %s26, 0
      %p142 = por %p140, %p141
      %p143 = scmp.le.s32.totalorder 1, %s20
      %p144 = scmp.lt.s32.totalorder %s20, 3
      %p145 = pnand %p143, %p144
      %p146 = pneg %p145
      // Predicated region
      $region9: #{tpu_custom_call.1} parent=5 // pred_check
        _
      $region10: #{tpu_custom_call.1} parent=5 // pred_check_branch
        %148 = sbr.rel (%p145) target = $region12
      $region11: #{tpu_custom_call.1} parent=5 // pred_region
        %s149 = ssub.s32 %s20, 1
        // Predicated region
        $region13: #{tpu_custom_call.1} parent=11 // pred_check
          %p150 = pneg %p53
        $region14: #{tpu_custom_call.1} parent=11 // pred_check_branch
          %152 = sbr.rel (%p150) target = $region16
        $region15: #{tpu_custom_call.1} parent=11 // pred_region
          %s154 = ssub.s32 256, 256
          %155 = vsyncadd [#allocation3], %s154
          %s156 = sshll.u32 [#allocation2], 4
          %s157 = int_to_ptr.vmem [resolvable:$true] %s156
          %162 = dma.hbm_to_vmem [thread:$0]  %s0, 256, %s157, [#allocation3], 64, 64, 4
        $region16: #{tpu_custom_call.1} parent=11 // pred_fallthru
          _
      $region12: #{tpu_custom_call.1} parent=5 // pred_fallthru
        _
      %p163 = scmp.lt.s32.totalorder %s20, 2
      // Predicated region
      $region17: #{tpu_custom_call.1} parent=5 // pred_check
        %p164 = pneg %p163
      $region18: #{tpu_custom_call.1} parent=5 // pred_check_branch
        %166 = sbr.rel (%p164) target = $region20
      $region19: #{tpu_custom_call.1} parent=5 // pred_region
        // Predicated region
        $region21: #{tpu_custom_call.1} parent=19 // pred_check
          %p167 = pneg %p75
        $region22: #{tpu_custom_call.1} parent=19 // pred_check_branch
          %169 = sbr.rel (%p167) target = $region24
        $region23: #{tpu_custom_call.1} parent=19 // pred_region
          %s170 = sand.u32 %s65, 1
          %s171 = scalar_lea.sflag [#allocation6], %s170
          %s172 = sand.u32 %s65, 1
          %s173 = smul.addr %s172, 40
          %s174 = scalar_lea.vmem [#allocation5], %s173
          %s175 = smul.u32 2, %s28
          %s177 = ssub.s32 640, 640
          %178 = vsyncadd %s171, %s177
          %s179 = smul.addr %s27, 10
          %s180 = sadd.s32 %s175, %s179
          %s181 = smul.addr %s180, 64
          %s182 = scalar_lea.hbm %s1, %s181
          %s183 = sshll.u32 %s174, 4
          %s184 = int_to_ptr.vmem [resolvable:$true] %s183
          %189 = dma.hbm_to_vmem [thread:$0]  %s182, 640, %s184, %s171, 128, 128, 8
        $region24: #{tpu_custom_call.1} parent=19 // pred_fallthru
          _
      $region20: #{tpu_custom_call.1} parent=5 // pred_fallthru
        _
      %p190 = scmp.le.s32.totalorder 1, %s20
      %p191 = scmp.lt.s32.totalorder %s20, 3
      %p192 = pnand %p190, %p191
      %p193 = pneg %p192
      // Predicated region
      $region25: #{tpu_custom_call.1} parent=5 // pred_check
        _
      $region26: #{tpu_custom_call.1} parent=5 // pred_check_branch
        %195 = sbr.rel (%p192) target = $region28
      $region27: #{tpu_custom_call.1} parent=5 // pred_region
        %s196 = ssub.s32 %s20, 1
        // Predicated region
        $region29: #{tpu_custom_call.1} parent=27 // pred_check
          %p197 = pneg %p53
        $region30: #{tpu_custom_call.1} parent=27 // pred_check_branch
          %199 = sbr.rel (%p197) target = $region32
        $region31: #{tpu_custom_call.1} parent=27 // pred_region
          %200 = dma.done [#allocation3], 256
        $region32: #{tpu_custom_call.1} parent=27 // pred_fallthru
          _
        %s201 = sand.u32 %s68, 1
        %s202 = scalar_lea.sflag [#allocation6], %s201
        %s203 = sand.u32 %s68, 1
        %s204 = smul.addr %s203, 40
        %s205 = scalar_lea.vmem [#allocation5], %s204
        // Predicated region
        $region33: #{tpu_custom_call.1} parent=27 // pred_check
          %p206 = pneg %p81
        $region34: #{tpu_custom_call.1} parent=27 // pred_check_branch
          %208 = sbr.rel (%p206) target = $region36
        $region35: #{tpu_custom_call.1} parent=27 // pred_region
          %209 = dma.done %s202, 640
        $region36: #{tpu_custom_call.1} parent=27 // pred_fallthru
          _
        %p210 = pneg %p53
        %p211 = pneg %p50
        %s212 = sand.u32 %s68, 1
        %s213 = scalar_lea.sflag [#allocation6], %s212
        %s214 = sand.u32 %s68, 1
        %s215 = smul.addr %s214, 40
        %s216 = scalar_lea.vmem [#allocation5], %s215
        %p217 = pneg %p81
        %p218 = pneg %p78
        %p219 = pneg %p109
        %p220 = pneg %p106
        %s221 = sand.u32 %s96, 1
        %s222 = scalar_lea.sflag [#allocation4], %s221
        %s223 = sand.u32 %s96, 1
        %s224 = smul.addr %s223, 64
        %s225 = scalar_lea.vmem [#allocation7], %s224
        %p226 = pneg %p135
        %p227 = pneg %p132
        %s228 = sand.u32 %s122, 1
        %s229 = scalar_lea.sflag [#allocation9], %s228
        %s230 = sand.u32 %s122, 1
        %s231 = scalar_lea.vmem [#allocation8], %s230
        %s232 = smul.u32 2, %s30
        %s233 = smul.u32 2, %s30
        %v235 = vld [vmem:[#allocation2] sm:$0xf]
        %v236 = vld [vmem:[#allocation2 + $0x4] sm:$0xf]
        %v237 = vld [vmem:[#allocation2 + $0x8] sm:$0xf]
        %v238 = vld [vmem:[#allocation2 + $0xc] sm:$0xf]
        %v239 = vld [vmem:[%s205] sm:$0xff]
        %v240 = vld [vmem:[%s205 + $0x8] sm:$0xff]
        %v241 = vld [vmem:[%s205 + $0x10] sm:$0xff]
        %v242 = vld [vmem:[%s205 + $0x18] sm:$0xff]
        %v243 = vld [vmem:[%s205 + $0x20] sm:$0xff]
        %v248 = vunpack.c.l.b16 %v235
        %v249 = vunpack.c.l.b16 %v236
        %v250 = vunpack.c.l.b16 %v237
        %v251 = vunpack.c.l.b16 %v238
        %v252 = vpack.c.b16 %v249, %v248
        %v253 = vpack.c.b16 %v251, %v250
        %v259 = vunpack.c.l.b16 %v239
        %v260 = vunpack.c.h.b16 %v239
        %v261 = vunpack.c.l.b16 %v240
        %v262 = vunpack.c.h.b16 %v240
        %v263 = vunpack.c.l.b16 %v241
        %v264 = vunpack.c.h.b16 %v241
        %v265 = vunpack.c.l.b16 %v242
        %v266 = vunpack.c.h.b16 %v242
        %v267 = vunpack.c.l.b16 %v243
        %v268 = vunpack.c.h.b16 %v243
        %v269 = vpack.c.b16 %v261, %v259
        %v270 = vpack.c.b16 %v262, %v260
        %v271 = vpack.c.b16 %v265, %v263
        %v272 = vpack.c.b16 %v266, %v264
        %v273 = vpack.c.b16 %v267, %v267
        %v274 = vpack.c.b16 %v268, %v268
        %vm279 = vcmask 326656
        %v281 = vsel %vm279, %v252, 0
        %v284 = vsel %vm279, %v253, 0
        %vm286 = vcmask 1043456
        %v288 = vsel %vm286, %v273, 0
        %v291 = vsel %vm286, %v274, 0
        %293 = vmatprep.subr.bf16.mxu0 %v270
        %294 = vmatpush1.bf16.msra.mxu0 %v269
        %295 = vmatprep.subr.bf16.mxu0 %v272
        %296 = vmatpush1.bf16.msra.mxu0 %v271
        %297 = vmatprep.subr.bf16.mxu0 %v291
        %298 = vmatpush1.bf16.msra.mxu0 %v288
        %299 = vmatprep.subr.bf16.mxu0 0
        %300 = vmatpush1.bf16.msra.mxu0 0
        %301 = vmatprep.subr.bf16.mxu0 0
        %302 = vmatpush1.bf16.msra.mxu0 0
        %303 = vmatprep.subr.bf16.mxu0 0
        %304 = vmatpush1.bf16.msra.mxu0 0
        %305 = vmatprep.subr.bf16.mxu0 0
        %306 = vmatpush1.bf16.msra.mxu0 0
        %307 = vmatprep.subr.bf16.mxu0 0
        %308 = vmatpush1.bf16.msra.mxu0 0
        %309 = vmatprep.subr.bf16.mxu0 0
        %310 = vmatpush1.bf16.msra.mxu0 0
        %311 = vmatprep.subr.bf16.mxu0 0
        %312 = vmatpush1.bf16.msra.mxu0 0
        %313 = vmatprep.subr.bf16.mxu0 0
        %314 = vmatpush1.bf16.msra.mxu0 0
        %315 = vmatprep.subr.bf16.mxu0 0
        %316 = vmatpush1.bf16.msra.mxu0 0
        %317 = vmatprep.subr.bf16.mxu0 0
        %318 = vmatpush1.bf16.msra.mxu0 0
        %319 = vmatprep.subr.bf16.mxu0 0
        %320 = vmatpush1.bf16.msra.mxu0 0
        %321 = vmatprep.subr.bf16.mxu0 0
        %322 = vmatpush1.bf16.msra.mxu0 0
        %323 = vmatprep.subr.bf16.mxu0 0
        %324 = vmatpush1.bf16.msra.mxu0 0
        %325 = vmatprep.mubr.bf16.mxu0 0
        %326 = vmatmul.mubr.bf16.gmra.mrb[0].mxu0 %v281
        %v327 = vpop.f32.mrb[0].mxu0
        %v328 = vadd.f32 0.0, %v327
        %v329 = vpop.f32.mrb[0].mxu0
        %v330 = vadd.f32 0.0, %v329
        %v331 = vpop.f32.mrb[0].mxu0
        %v332 = vadd.f32 0.0, %v331
        %v333 = vpop.f32.mrb[0].mxu0
        %v334 = vadd.f32 0.0, %v333
        %335 = vmatprep.mubr.bf16.mxu0 0
        %336 = vmatmul.mubr.bf16.gmra.mrb[0].mxu0 %v284
        %v337 = vpop.f32.mrb[0].mxu0
        %v338 = vadd.f32 0.0, %v337
        %v339 = vpop.f32.mrb[0].mxu0
        %v340 = vadd.f32 0.0, %v339
        %v341 = vpop.f32.mrb[0].mxu0
        %v342 = vadd.f32 0.0, %v341
        %v343 = vpop.f32.mrb[0].mxu0
        %v344 = vadd.f32 0.0, %v343
        %345 = vdwg.mxu0
        %346 = vst [vmem:[%s225] sm:$0xff] %v328
        %347 = vst [vmem:[%s225 + $0x8] sm:$0xff] %v330
        %348 = vst [vmem:[%s225 + $0x10] sm:$0xff] %v332
        %349 = vst [vmem:[%s225 + $0x18] sm:$0xff] %v334
        %350 = vst [vmem:[%s225 + $0x20] sm:$0xff] %v338
        %351 = vst [vmem:[%s225 + $0x28] sm:$0xff] %v340
        %352 = vst [vmem:[%s225 + $0x30] sm:$0xff] %v342
        %353 = vst [vmem:[%s225 + $0x38] sm:$0xff] %v344
        %p354 = scmp.eq.s32.totalorder %s30, 0
        // Predicated region
        $region37: #{tpu_custom_call.1} parent=27 // pred_check
          %p355 = pneg %p354
        $region38: #{tpu_custom_call.1} parent=27 // pred_check_branch
          %357 = sbr.rel (%p355) target = $region40
        $region39: #{tpu_custom_call.1} parent=27 // pred_region
          %vm358 = vcmask 253952
          %359 = vst.msk [vmem:[%s231] sm:$0x1] %vm358, 0.0
        $region40: #{tpu_custom_call.1} parent=27 // pred_fallthru
          _
        %v360 = vld [vmem:[%s231] sm:$0x1]
        %v361 = vadd.f32 %v328, %v330
        %362 = vadd.xlane.f32.xlu0 %v361
        %v363 = vpop.xlane.xlu0 %362
        %v364 = vadd.f32 %v332, %v334
        %365 = vadd.xlane.f32.xlu0 %v364
        %v366 = vpop.xlane.xlu0 %365
        %v367 = vadd.f32 %v338, %v340
        %368 = vadd.xlane.f32.xlu0 %v367
        %v369 = vpop.xlane.xlu0 %368
        %v370 = vadd.f32 %v342, %v344
        %371 = vadd.xlane.f32.xlu0 %v370
        %v372 = vpop.xlane.xlu0 %371
        %v373 = vmul.f32 %v363, 0.00390625
        %v374 = vmul.f32 %v366, 0.00390625
        %v375 = vmul.f32 %v369, 0.00390625
        %v376 = vmul.f32 %v372, 0.00390625
        %v381 = vlaneseq
        %v382 = vshrl.u32 %v381, 7
        %v383 = vsub.s32 0, %v382
        %v384 = vrot.slane %v373, %v383
        %v385 = vlaneseq
        %v386 = vshrl.u32 %v385, 7
        %v387 = vsub.s32 1, %v386
        %v388 = vrot.slane %v373, %v387
        %v389 = vlaneseq
        %v390 = vshrl.u32 %v389, 7
        %v391 = vsub.s32 2, %v390
        %v392 = vrot.slane %v373, %v391
        %v393 = vlaneseq
        %v394 = vshrl.u32 %v393, 7
        %v395 = vsub.s32 3, %v394
        %v396 = vrot.slane %v373, %v395
        %v397 = vlaneseq
        %v398 = vshrl.u32 %v397, 7
        %v399 = vsub.s32 4, %v398
        %v400 = vrot.slane %v373, %v399
        %v401 = vlaneseq
        %v402 = vshrl.u32 %v401, 7
        %v403 = vsub.s32 5, %v402
        %v404 = vrot.slane %v373, %v403
        %v405 = vlaneseq
        %v406 = vshrl.u32 %v405, 7
        %v407 = vsub.s32 6, %v406
        %v408 = vrot.slane %v373, %v407
        %v409 = vlaneseq
        %v410 = vshrl.u32 %v409, 7
        %v411 = vsub.s32 7, %v410
        %v412 = vrot.slane %v373, %v411
        %v413 = vlaneseq
        %v414 = vshrl.u32 %v413, 7
        %v415 = vsub.s32 0, %v414
        %v416 = vrot.slane %v374, %v415
        %v417 = vlaneseq
        %v418 = vshrl.u32 %v417, 7
        %v419 = vsub.s32 1, %v418
        %v420 = vrot.slane %v374, %v419
        %v421 = vlaneseq
        %v422 = vshrl.u32 %v421, 7
        %v423 = vsub.s32 2, %v422
        %v424 = vrot.slane %v374, %v423
        %v425 = vlaneseq
        %v426 = vshrl.u32 %v425, 7
        %v427 = vsub.s32 3, %v426
        %v428 = vrot.slane %v374, %v427
        %v429 = vlaneseq
        %v430 = vshrl.u32 %v429, 7
        %v431 = vsub.s32 4, %v430
        %v432 = vrot.slane %v374, %v431
        %v433 = vlaneseq
        %v434 = vshrl.u32 %v433, 7
        %v435 = vsub.s32 5, %v434
        %v436 = vrot.slane %v374, %v435
        %v437 = vlaneseq
        %v438 = vshrl.u32 %v437, 7
        %v439 = vsub.s32 6, %v438
        %v440 = vrot.slane %v374, %v439
        %v441 = vlaneseq
        %v442 = vshrl.u32 %v441, 7
        %v443 = vsub.s32 7, %v442
        %v444 = vrot.slane %v374, %v443
        %v445 = vlaneseq
        %v446 = vshrl.u32 %v445, 7
        %v447 = vsub.s32 0, %v446
        %v448 = vrot.slane %v375, %v447
        %v449 = vlaneseq
        %v450 = vshrl.u32 %v449, 7
        %v451 = vsub.s32 1, %v450
        %v452 = vrot.slane %v375, %v451
        %v453 = vlaneseq
        %v454 = vshrl.u32 %v453, 7
        %v455 = vsub.s32 2, %v454
        %v456 = vrot.slane %v375, %v455
        %v457 = vlaneseq
        %v458 = vshrl.u32 %v457, 7
        %v459 = vsub.s32 3, %v458
        %v460 = vrot.slane %v375, %v459
        %v461 = vlaneseq
        %v462 = vshrl.u32 %v461, 7
        %v463 = vsub.s32 4, %v462
        %v464 = vrot.slane %v375, %v463
        %v465 = vlaneseq
        %v466 = vshrl.u32 %v465, 7
        %v467 = vsub.s32 5, %v466
        %v468 = vrot.slane %v375, %v467
        %v469 = vlaneseq
        %v470 = vshrl.u32 %v469, 7
        %v471 = vsub.s32 6, %v470
        %v472 = vrot.slane %v375, %v471
        %v473 = vlaneseq
        %v474 = vshrl.u32 %v473, 7
        %v475 = vsub.s32 7, %v474
        %v476 = vrot.slane %v375, %v475
        %v477 = vlaneseq
        %v478 = vshrl.u32 %v477, 7
        %v479 = vsub.s32 0, %v478
        %v480 = vrot.slane %v376, %v479
        %v481 = vlaneseq
        %v482 = vshrl.u32 %v481, 7
        %v483 = vsub.s32 1, %v482
        %v484 = vrot.slane %v376, %v483
        %v485 = vlaneseq
        %v486 = vshrl.u32 %v485, 7
        %v487 = vsub.s32 2, %v486
        %v488 = vrot.slane %v376, %v487
        %v489 = vlaneseq
        %v490 = vshrl.u32 %v489, 7
        %v491 = vsub.s32 3, %v490
        %v492 = vrot.slane %v376, %v491
        %v493 = vlaneseq
        %v494 = vshrl.u32 %v493, 7
        %v495 = vsub.s32 4, %v494
        %v496 = vrot.slane %v376, %v495
        %v497 = vlaneseq
        %v498 = vshrl.u32 %v497, 7
        %v499 = vsub.s32 5, %v498
        %v500 = vrot.slane %v376, %v499
        %v501 = vlaneseq
        %v502 = vshrl.u32 %v501, 7
        %v503 = vsub.s32 6, %v502
        %v504 = vrot.slane %v376, %v503
        %v505 = vlaneseq
        %v506 = vshrl.u32 %v505, 7
        %v507 = vsub.s32 7, %v506
        %v508 = vrot.slane %v376, %v507
        %v509 = vcombine.low %v384, %v388
        %v510 = vcombine.low %v392, %v396
        %v511 = vcombine.low %v400, %v404
        %v512 = vcombine.low %v408, %v412
        %v514 = vunpack.c.l.s4 1966171168
        %v515 = vunpack.c.0.s8 %v514
        %v516 = vlaneseq
        %v517 = vshrl.u32 %v516, 7
        %v518 = vsub.s32 %v515, %v517
        %v519 = vrot.slane %v509, %v518
        %v521 = vunpack.c.l.s4 1966171168
        %v522 = vunpack.c.0.s8 %v521
        %v523 = vlaneseq
        %v524 = vshrl.u32 %v523, 7
        %v525 = vsub.s32 %v522, %v524
        %v526 = vrot.slane %v510, %v525
        %v528 = vunpack.c.l.s4 1966171168
        %v529 = vunpack.c.0.s8 %v528
        %v530 = vlaneseq
        %v531 = vshrl.u32 %v530, 7
        %v532 = vsub.s32 %v529, %v531
        %v533 = vrot.slane %v511, %v532
        %v535 = vunpack.c.l.s4 1966171168
        %v536 = vunpack.c.0.s8 %v535
        %v537 = vlaneseq
        %v538 = vshrl.u32 %v537, 7
        %v539 = vsub.s32 %v536, %v538
        %v540 = vrot.slane %v512, %v539
        %v541 = vcombine.low %v519, %v526
        %v542 = vcombine.low %v533, %v540
        %v544 = vunpack.c.l.s4 1966171168
        %v545 = vunpack.c.0.s8 %v544
        %v546 = vlaneseq
        %v547 = vshrl.u32 %v546, 7
        %v548 = vsub.s32 %v545, %v547
        %v549 = vrot.slane %v541, %v548
        %v551 = vunpack.c.l.s4 1966171168
        %v552 = vunpack.c.0.s8 %v551
        %v553 = vlaneseq
        %v554 = vshrl.u32 %v553, 7
        %v555 = vsub.s32 %v552, %v554
        %v556 = vrot.slane %v542, %v555
        %v557 = vcombine.low %v549, %v556
        %v558 = vcombine.low %v416, %v420
        %v559 = vcombine.low %v424, %v428
        %v560 = vcombine.low %v432, %v436
        %v561 = vcombine.low %v440, %v444
        %v563 = vunpack.c.l.s4 1966171168
        %v564 = vunpack.c.0.s8 %v563
        %v565 = vlaneseq
        %v566 = vshrl.u32 %v565, 7
        %v567 = vsub.s32 %v564, %v566
        %v568 = vrot.slane %v558, %v567
        %v570 = vunpack.c.l.s4 1966171168
        %v571 = vunpack.c.0.s8 %v570
        %v572 = vlaneseq
        %v573 = vshrl.u32 %v572, 7
        %v574 = vsub.s32 %v571, %v573
        %v575 = vrot.slane %v559, %v574
        %v577 = vunpack.c.l.s4 1966171168
        %v578 = vunpack.c.0.s8 %v577
        %v579 = vlaneseq
        %v580 = vshrl.u32 %v579, 7
        %v581 = vsub.s32 %v578, %v580
        %v582 = vrot.slane %v560, %v581
        %v584 = vunpack.c.l.s4 1966171168
        %v585 = vunpack.c.0.s8 %v584
        %v586 = vlaneseq
        %v587 = vshrl.u32 %v586, 7
        %v588 = vsub.s32 %v585, %v587
        %v589 = vrot.slane %v561, %v588
        %v590 = vcombine.low %v568, %v575
        %v591 = vcombine.low %v582, %v589
        %v593 = vunpack.c.l.s4 1966171168
        %v594 = vunpack.c.0.s8 %v593
        %v595 = vlaneseq
        %v596 = vshrl.u32 %v595, 7
        %v597 = vsub.s32 %v594, %v596
        %v598 = vrot.slane %v590, %v597
        %v600 = vunpack.c.l.s4 1966171168
        %v601 = vunpack.c.0.s8 %v600
        %v602 = vlaneseq
        %v603 = vshrl.u32 %v602, 7
        %v604 = vsub.s32 %v601, %v603
        %v605 = vrot.slane %v591, %v604
        %v606 = vcombine.low %v598, %v605
        %v607 = vcombine.low %v448, %v452
        %v608 = vcombine.low %v456, %v460
        %v609 = vcombine.low %v464, %v468
        %v610 = vcombine.low %v472, %v476
        %v612 = vunpack.c.l.s4 1966171168
        %v613 = vunpack.c.0.s8 %v612
        %v614 = vlaneseq
        %v615 = vshrl.u32 %v614, 7
        %v616 = vsub.s32 %v613, %v615
        %v617 = vrot.slane %v607, %v616
        %v619 = vunpack.c.l.s4 1966171168
        %v620 = vunpack.c.0.s8 %v619
        %v621 = vlaneseq
        %v622 = vshrl.u32 %v621, 7
        %v623 = vsub.s32 %v620, %v622
        %v624 = vrot.slane %v608, %v623
        %v626 = vunpack.c.l.s4 1966171168
        %v627 = vunpack.c.0.s8 %v626
        %v628 = vlaneseq
        %v629 = vshrl.u32 %v628, 7
        %v630 = vsub.s32 %v627, %v629
        %v631 = vrot.slane %v609, %v630
        %v633 = vunpack.c.l.s4 1966171168
        %v634 = vunpack.c.0.s8 %v633
        %v635 = vlaneseq
        %v636 = vshrl.u32 %v635, 7
        %v637 = vsub.s32 %v634, %v636
        %v638 = vrot.slane %v610, %v637
        %v639 = vcombine.low %v617, %v624
        %v640 = vcombine.low %v631, %v638
        %v642 = vunpack.c.l.s4 1966171168
        %v643 = vunpack.c.0.s8 %v642
        %v644 = vlaneseq
        %v645 = vshrl.u32 %v644, 7
        %v646 = vsub.s32 %v643, %v645
        %v647 = vrot.slane %v639, %v646
        %v649 = vunpack.c.l.s4 1966171168
        %v650 = vunpack.c.0.s8 %v649
        %v651 = vlaneseq
        %v652 = vshrl.u32 %v651, 7
        %v653 = vsub.s32 %v650, %v652
        %v654 = vrot.slane %v640, %v653
        %v655 = vcombine.low %v647, %v654
        %v656 = vcombine.low %v480, %v484
        %v657 = vcombine.low %v488, %v492
        %v658 = vcombine.low %v496, %v500
        %v659 = vcombine.low %v504, %v508
        %v661 = vunpack.c.l.s4 1966171168
        %v662 = vunpack.c.0.s8 %v661
        %v663 = vlaneseq
        %v664 = vshrl.u32 %v663, 7
        %v665 = vsub.s32 %v662, %v664
        %v666 = vrot.slane %v656, %v665
        %v668 = vunpack.c.l.s4 1966171168
        %v669 = vunpack.c.0.s8 %v668
        %v670 = vlaneseq
        %v671 = vshrl.u32 %v670, 7
        %v672 = vsub.s32 %v669, %v671
        %v673 = vrot.slane %v657, %v672
        %v675 = vunpack.c.l.s4 1966171168
        %v676 = vunpack.c.0.s8 %v675
        %v677 = vlaneseq
        %v678 = vshrl.u32 %v677, 7
        %v679 = vsub.s32 %v676, %v678
        %v680 = vrot.slane %v658, %v679
        %v682 = vunpack.c.l.s4 1966171168
        %v683 = vunpack.c.0.s8 %v682
        %v684 = vlaneseq
        %v685 = vshrl.u32 %v684, 7
        %v686 = vsub.s32 %v683, %v685
        %v687 = vrot.slane %v659, %v686
        %v688 = vcombine.low %v666, %v673
        %v689 = vcombine.low %v680, %v687
        %v691 = vunpack.c.l.s4 1966171168
        %v692 = vunpack.c.0.s8 %v691
        %v693 = vlaneseq
        %v694 = vshrl.u32 %v693, 7
        %v695 = vsub.s32 %v692, %v694
        %v696 = vrot.slane %v688, %v695
        %v698 = vunpack.c.l.s4 1966171168
        %v699 = vunpack.c.0.s8 %v698
        %v700 = vlaneseq
        %v701 = vshrl.u32 %v700, 7
        %v702 = vsub.s32 %v699, %v701
        %v703 = vrot.slane %v689, %v702
        %v704 = vcombine.low %v696, %v703
        %705 = vset.pattern.permute.xlu0 0
        %706 = vperm.xlu0 %705, %v557
        %v707 = vpop.permute.xlu0 %706
        %708 = vset.pattern.permute.xlu0 0
        %709 = vperm.xlu0 %708, %v606
        %v710 = vpop.permute.xlu0 %709
        %711 = vset.pattern.permute.xlu0 0
        %712 = vperm.xlu0 %711, %v655
        %v713 = vpop.permute.xlu0 %712
        %714 = vset.pattern.permute.xlu0 0
        %715 = vperm.xlu0 %714, %v704
        %v716 = vpop.permute.xlu0 %715
        %v717 = vlaneseq
        %v718 = vand.u32 %v717, 127
        %v719 = vlaneseq
        %v720 = vshrl.u32 %v719, 7
        %v721 = vsub.s32 %v718, %v720
        %v722 = vrot.slane %v707, %v721
        %v723 = vadd.s32 %v718, 4294967288
        %v724 = vlaneseq
        %v725 = vshrl.u32 %v724, 7
        %v726 = vsub.s32 %v723, %v725
        %v727 = vrot.slane %v710, %v726
        %vm728 = vcmask 130112
        %v729 = vsel %vm728, %v727, %v722
        %v730 = vadd.s32 %v718, 4294967280
        %v731 = vlaneseq
        %v732 = vshrl.u32 %v731, 7
        %v733 = vsub.s32 %v730, %v732
        %v734 = vrot.slane %v713, %v733
        %vm735 = vcmask 195712
        %v736 = vsel %vm735, %v734, %v729
        %v737 = vadd.s32 %v718, 4294967272
        %v738 = vlaneseq
        %v739 = vshrl.u32 %v738, 7
        %v740 = vsub.s32 %v737, %v739
        %v741 = vrot.slane %v716, %v740
        %vm742 = vcmask 261312
        %v743 = vsel %vm742, %v741, %v736
        %v745 = vunpack.c.l.s4 1966171168
        %v746 = vunpack.c.0.s8 %v745
        %v747 = vlaneseq
        %v748 = vshrl.u32 %v747, 7
        %v749 = vsub.s32 %v746, %v748
        %v750 = vrot.slane %v743, %v749
        %v752 = vunpack.c.l.s4 1966171168
        %v753 = vunpack.c.0.s8 %v752
        %v754 = vlaneseq
        %v755 = vshrl.u32 %v754, 7
        %v756 = vsub.s32 %v753, %v755
        %v757 = vrot.slane %v750, %v756
        %v759 = vadd.f32 %v360, %v757
        %vm760 = vcmask 253952
        %761 = vst.msk [vmem:[%s231] sm:$0x1] %vm760, %v759
        %s762 = sand.u32 %s96, 1
        %s763 = scalar_lea.sflag [#allocation4], %s762
        %s764 = sand.u32 %s96, 1
        %s765 = smul.addr %s764, 64
        %s766 = scalar_lea.vmem [#allocation7], %s765
        %s767 = sand.u32 %s122, 1
        %s768 = scalar_lea.sflag [#allocation9], %s767
        %s769 = sand.u32 %s122, 1
        %s770 = scalar_lea.vmem [#allocation8], %s769
        // Predicated region
        $region41: #{tpu_custom_call.1} parent=27 // pred_check
          %p771 = pneg %p106
        $region42: #{tpu_custom_call.1} parent=27 // pred_check_branch
          %773 = sbr.rel (%p771) target = $region44
        $region43: #{tpu_custom_call.1} parent=27 // pred_region
          %s774 = smul.u32 2, %s30
          %s776 = ssub.s32 1024, 1024
          %777 = vsyncadd %s763, %s776
          %s778 = smul.addr %s29, 8
          %s779 = sadd.s32 %s774, %s778
          %s780 = smul.addr %s779, 128
          %s781 = scalar_lea.hbm %s2, %s780
          %s782 = sshll.u32 %s766, 4
          %s783 = int_to_ptr.vmem [resolvable:$true] %s782
          %788 = dma.vmem_to_hbm [thread:$0]  %s783, 1024, %s781, %s763, 256, 256, 16
        $region44: #{tpu_custom_call.1} parent=27 // pred_fallthru
          _
        // Predicated region
        $region45: #{tpu_custom_call.1} parent=27 // pred_check
          %p789 = pneg %p132
        $region46: #{tpu_custom_call.1} parent=27 // pred_check_branch
          %791 = sbr.rel (%p789) target = $region48
        $region47: #{tpu_custom_call.1} parent=27 // pred_region
          %s793 = ssub.s32 16, 16
          %794 = vsyncadd %s768, %s793
          %s795 = smul.addr %s29, 16
          %s796 = scalar_lea.hbm %s3, %s795
          %s798 = sshll.u32 %s770, 4
          %s799 = int_to_ptr.vmem [resolvable:$true] %s798
          %801 = dma.vmem_to_hbm [thread:$0]  %s799, 16, %s796, %s768
        $region48: #{tpu_custom_call.1} parent=27 // pred_fallthru
          _
      $region28: #{tpu_custom_call.1} parent=5 // pred_fallthru
        _
      %p802 = scmp.le.s32.totalorder 2, %s20
      // Predicated region
      $region49: #{tpu_custom_call.1} parent=5 // pred_check
        %p803 = pneg %p802
      $region50: #{tpu_custom_call.1} parent=5 // pred_check_branch
        %805 = sbr.rel (%p803) target = $region52
      $region51: #{tpu_custom_call.1} parent=5 // pred_region
        %s806 = ssub.s32 %s20, 2
        // Predicated region
        $region53: #{tpu_custom_call.1} parent=51 // pred_check
          %p807 = pneg %p112
        $region54: #{tpu_custom_call.1} parent=51 // pred_check_branch
          %809 = sbr.rel (%p807) target = $region56
        $region55: #{tpu_custom_call.1} parent=51 // pred_region
          %s810 = sand.u32 %s97, 1
          %s811 = scalar_lea.sflag [#allocation4], %s810
          %s812 = sand.u32 %s97, 1
          %s813 = smul.addr %s812, 64
          %s814 = scalar_lea.vmem [#allocation7], %s813
          %815 = dma.done %s811, 1024
        $region56: #{tpu_custom_call.1} parent=51 // pred_fallthru
          _
        // Predicated region
        $region57: #{tpu_custom_call.1} parent=51 // pred_check
          %p816 = pneg %p138
        $region58: #{tpu_custom_call.1} parent=51 // pred_check_branch
          %818 = sbr.rel (%p816) target = $region60
        $region59: #{tpu_custom_call.1} parent=51 // pred_region
          %s819 = sand.u32 %s123, 1
          %s820 = scalar_lea.sflag [#allocation9], %s819
          %s821 = sand.u32 %s123, 1
          %s822 = scalar_lea.vmem [#allocation8], %s821
          %823 = dma.done %s820, 16
        $region60: #{tpu_custom_call.1} parent=51 // pred_fallthru
          _
      $region52: #{tpu_custom_call.1} parent=5 // pred_fallthru
        _
    $region6: #{tpu_custom_call.1} parent=1 // loop_footer
      %s24 = sadd.s32 1, %s20
    $region7: #{tpu_custom_call.1} parent=1 // loop_footer_branch
      %19 = sbr.rel target = $region3
    $region8: #{tpu_custom_call.1} parent=1 // loop_exit
      _
    %824 = vsyncpa [#allocation3], 1
    %s825 = scalar_lea.sflag [#allocation3], 1
    %826 = vsyncpa %s825, 1
    %827 = vsyncpa [#allocation6], 1
    %s828 = scalar_lea.sflag [#allocation6], 1
    %829 = vsyncpa %s828, 1
    %830 = vsyncpa [#allocation4], 1
    %s831 = scalar_lea.sflag [#allocation4], 1
    %832 = vsyncpa %s831, 1
    %833 = vsyncpa [#allocation9], 1
    %s834 = scalar_lea.sflag [#allocation9], 1
    %835 = vsyncpa %s834, 1

</llo_original>
